<compile_context>
chip_gen: v7x
topology: tpu7x:2x2x1
jax: 0.10.0
libtpu: 0.0.40
codegen_flags: <defaults>
</compile_context>

<pallas_src>
import functools

import jax
import jax.numpy as jnp
from jax.experimental import pallas as pl
from jax.experimental.pallas import tpu as pltpu

_LANE = 128


def _round_up(x, m):
    return ((x + m - 1) // m) * m


def _mpnn_kernel(a_ref, h_ref, w_ref, b_ref, o_ref, *, num_rounds):
    # a_ref: (Np, Np) bf16, h_ref: (Np, Fpi) bf16, w_ref: (Fpi, Fpo) bf16,
    # b_ref: (1, Fpo) f32, o_ref: (Np, Fpo) f32.  Everything lives in vregs.
    a = a_ref[...]                            # load adjacency once (exact 0/1 bf16)
    hf = h_ref[...].astype(jnp.float32)       # carried node state in f32 vregs

    # num_rounds is a small static int -> unrolled message-passing rounds.
    for _ in range(num_rounds):
        # h_new[dst] = sum_src A[dst, src] * h[src]   (bf16 MXU, f32 accumulate)
        hf = jnp.dot(a, hf.astype(jnp.bfloat16),
                     preferred_element_type=jnp.float32)

    # Final linear layer: (Np, Fpi) @ (Fpi, Fpo) + (1, Fpo)
    out = jnp.dot(hf.astype(jnp.bfloat16), w_ref[...],
                  preferred_element_type=jnp.float32)
    o_ref[...] = out + b_ref[...]


def mpnn_forward(adj, h, weight_t, bias, *, num_rounds):
    """adj: (B, N, N) or (N, N); h: (B, N, F_in) or (N, F_in);
    weight_t: (F_in, F_out) (pre-transposed nn.Linear weight); bias: (F_out,)."""
    squeeze_batch = adj.ndim == 2
    if squeeze_batch:
        adj = adj[None]
        h = h[None]
    bsz, n, _ = adj.shape
    f_in = h.shape[-1]
    f_out = weight_t.shape[1]

    # Pad every matmul dim to a lane multiple (128): full MXU tiles + lane-dense
    # output stores.  Zero padding is exact for this linear recurrence.
    n_p = _round_up(n, _LANE)
    fi_p = _round_up(f_in, _LANE)
    fo_p = _round_up(f_out, _LANE)

    adj_p = jnp.zeros((bsz, n_p, n_p), jnp.bfloat16)
    adj_p = adj_p.at[:, :n, :n].set(adj.astype(jnp.bfloat16))
    h_p = jnp.zeros((bsz, n_p, fi_p), jnp.bfloat16)
    h_p = h_p.at[:, :n, :f_in].set(h.astype(jnp.bfloat16))
    w_p = jnp.zeros((fi_p, fo_p), jnp.bfloat16)
    w_p = w_p.at[:f_in, :f_out].set(weight_t.astype(jnp.bfloat16))
    b_p = jnp.zeros((1, fo_p), jnp.float32)
    b_p = b_p.at[0, :f_out].set(bias.astype(jnp.float32))

    kernel = functools.partial(_mpnn_kernel, num_rounds=num_rounds)

    cost = pl.CostEstimate(
        flops=int(bsz * (2 * num_rounds * n_p * n_p * fi_p
                         + 2 * n_p * fi_p * fo_p)),
        transcendentals=0,
        bytes_accessed=int(adj_p.size * 2 + h_p.size * 2 + w_p.size * 2
                           + b_p.size * 4 + bsz * n_p * fo_p * 4),
    )

    out_p = pl.pallas_call(
        kernel,
        out_shape=jax.ShapeDtypeStruct((bsz, n_p, fo_p), jnp.float32),
        grid_spec=pltpu.PrefetchScalarGridSpec(
            num_scalar_prefetch=0,
            grid=(bsz,),
            in_specs=[
                pl.BlockSpec((None, n_p, n_p), lambda b: (b, 0, 0)),   # adjacency
                pl.BlockSpec((None, n_p, fi_p), lambda b: (b, 0, 0)),  # node feats
                pl.BlockSpec((fi_p, fo_p), lambda b: (0, 0)),          # W^T (shared)
                pl.BlockSpec((1, fo_p), lambda b: (0, 0)),             # bias (shared)
            ],
            out_specs=pl.BlockSpec((None, n_p, fo_p), lambda b: (b, 0, 0)),
        ),
        compiler_params=pltpu.CompilerParams(
            dimension_semantics=("parallel",),
        ),
        cost_estimate=cost,
    )(adj_p, h_p, w_p, b_p)

    out = out_p[:, :n, :f_out]
    if squeeze_batch:
        out = out[0]
    return out


def mpnn_reference(adj, h, weight_t, bias, *, num_rounds):
    if adj.ndim == 2:
        adj = adj[None]
        h = h[None]
        squeeze = True
    else:
        squeeze = False
    af = adj.astype(jnp.float32)
    hf = h.astype(jnp.float32)
    for _ in range(num_rounds):
        hf = jnp.einsum("bij,bjf->bif", af, hf)
    out = jnp.einsum("bif,fo->bio", hf, weight_t.astype(jnp.float32))
    out = out + bias.astype(jnp.float32)
    return out[0] if squeeze else out


if __name__ == "__main__":
    # Small deterministic setup: a batch of 2 graphs.
    B = 2
    N = 64          # number of graph nodes
    IN_FEATS = 32
    OUT_FEATS = 16
    NUM_ROUNDS = 3

    key = jax.random.PRNGKey(0)
    k_adj, k_h, k_w, k_b = jax.random.split(key, 4)

    # Random sparse-ish 0/1 adjacency (dst x src), plain copy_u + sum reduce.
    adj = (jax.random.uniform(k_adj, (B, N, N)) < 0.15).astype(jnp.float32)
    h = jax.random.normal(k_h, (B, N, IN_FEATS), dtype=jnp.float32)

    # nn.Linear(in_feats, out_feats): weight (out, in), bias (out,), with the
    # PyTorch-style bound = 1/sqrt(in_feats).
    bound = 1.0 / (IN_FEATS ** 0.5)
    w = jax.random.uniform(k_w, (OUT_FEATS, IN_FEATS),
                           minval=-bound, maxval=bound, dtype=jnp.float32)
    b = jax.random.uniform(k_b, (OUT_FEATS,),
                           minval=-bound, maxval=bound, dtype=jnp.float32)
    w_t = w.T  # (IN_FEATS, OUT_FEATS)

    out = mpnn_forward(adj, h, w_t, b, num_rounds=NUM_ROUNDS)
    out = jax.block_until_ready(out)

    ref = mpnn_reference(adj, h, w_t, b, num_rounds=NUM_ROUNDS)
    assert out.shape == (B, N, OUT_FEATS)
    # bf16 MXU operands (f32 accumulation) -> use a normalized error check.
    rel_err = float(jnp.max(jnp.abs(out - ref)) / (jnp.max(jnp.abs(ref)) + 1e-6))
    assert rel_err < 2e-2, f"mismatch vs reference: rel_err={rel_err}"

    # TODO(synk): message_func/reduce_func are opaque callables in the PyTorch
    # module; this kernel implements the canonical copy_u + sum pair, and the
    # unused activation/dropout from __init__ are intentionally omitted.
    print("KERNEL_OK")
</pallas_src>

<mosaic_0001>
module attributes {stable_mosaic.version = 11 : i64} {
  func.func @_mpnn_kernel(%arg0: i32, %arg1: memref<1x128x128xbf16, #tpu.memory_space<vmem>>, %arg2: memref<1x128x128xbf16, #tpu.memory_space<vmem>>, %arg3: memref<128x128xbf16, #tpu.memory_space<vmem>>, %arg4: memref<1x128xf32, #tpu.memory_space<vmem>>, %arg5: memref<1x128x128xf32, #tpu.memory_space<vmem>>) attributes {dimension_semantics = [#tpu.dimension_semantics<parallel>], iteration_bounds = array<i64: 2>, scalar_prefetch = 0 : i64, scratch_operands = 0 : i64, tpu.core_type = #tpu.core_type<tc>, window_params = [{transform_indices = @transform_0, window_bounds = array<i64: 1, 128, 128>}, {transform_indices = @transform_1, window_bounds = array<i64: 1, 128, 128>}, {pipeline_mode = #tpu.pipeline_mode<synchronous>, transform_indices = @transform_2, window_bounds = array<i64: 128, 128>}, {pipeline_mode = #tpu.pipeline_mode<synchronous>, transform_indices = @transform_3, window_bounds = array<i64: 1, 128>}, {transform_indices = @transform_4, window_bounds = array<i64: 1, 128, 128>}]} {
    %c0 = arith.constant 0 : index
    %c0_0 = arith.constant 0 : index
    %c0_1 = arith.constant 0 : index
    %0 = vector.load %arg1[%c0, %c0_0, %c0_1] : memref<1x128x128xbf16, #tpu.memory_space<vmem>>, vector<1x128x128xbf16>
    %1 = vector.shape_cast %0 : vector<1x128x128xbf16> to vector<128x128xbf16>
    %c0_2 = arith.constant 0 : index
    %c0_3 = arith.constant 0 : index
    %c0_4 = arith.constant 0 : index
    %2 = vector.load %arg2[%c0_2, %c0_3, %c0_4] : memref<1x128x128xbf16, #tpu.memory_space<vmem>>, vector<1x128x128xbf16>
    %3 = vector.shape_cast %2 : vector<1x128x128xbf16> to vector<128x128xbf16>
    %4 = arith.extf %3 : vector<128x128xbf16> to vector<128x128xf32>
    %5 = arith.truncf %4 : vector<128x128xf32> to vector<128x128xbf16>
    %cst = arith.constant dense<0.000000e+00> : vector<128x128xf32>
    %6 = tpu.matmul %1, %5, %cst {dimension_numbers = #tpu.dot_dimension_numbers<[1], [0], [0], [1], [0, 0, 1, 1], [], []>} : vector<128x128xbf16>, vector<128x128xbf16>, vector<128x128xf32> -> vector<128x128xf32>
    %7 = arith.truncf %6 : vector<128x128xf32> to vector<128x128xbf16>
    %cst_5 = arith.constant dense<0.000000e+00> : vector<128x128xf32>
    %8 = tpu.matmul %1, %7, %cst_5 {dimension_numbers = #tpu.dot_dimension_numbers<[1], [0], [0], [1], [0, 0, 1, 1], [], []>} : vector<128x128xbf16>, vector<128x128xbf16>, vector<128x128xf32> -> vector<128x128xf32>
    %9 = arith.truncf %8 : vector<128x128xf32> to vector<128x128xbf16>
    %cst_6 = arith.constant dense<0.000000e+00> : vector<128x128xf32>
    %10 = tpu.matmul %1, %9, %cst_6 {dimension_numbers = #tpu.dot_dimension_numbers<[1], [0], [0], [1], [0, 0, 1, 1], [], []>} : vector<128x128xbf16>, vector<128x128xbf16>, vector<128x128xf32> -> vector<128x128xf32>
    %11 = arith.truncf %10 : vector<128x128xf32> to vector<128x128xbf16>
    %c0_7 = arith.constant 0 : index
    %c0_8 = arith.constant 0 : index
    %12 = vector.load %arg3[%c0_7, %c0_8] : memref<128x128xbf16, #tpu.memory_space<vmem>>, vector<128x128xbf16>
    %cst_9 = arith.constant dense<0.000000e+00> : vector<128x128xf32>
    %13 = tpu.matmul %11, %12, %cst_9 {dimension_numbers = #tpu.dot_dimension_numbers<[1], [0], [0], [1], [0, 0, 1, 1], [], []>} : vector<128x128xbf16>, vector<128x128xbf16>, vector<128x128xf32> -> vector<128x128xf32>
    %c0_10 = arith.constant 0 : index
    %c0_11 = arith.constant 0 : index
    %14 = vector.load %arg4[%c0_10, %c0_11] : memref<1x128xf32, #tpu.memory_space<vmem>>, vector<1x128xf32>
    %15 = vector.broadcast %14 : vector<1x128xf32> to vector<128x128xf32>
    %16 = arith.addf %13, %15 : vector<128x128xf32>
    %c0_12 = arith.constant 0 : index
    %c0_13 = arith.constant 0 : index
    %c0_14 = arith.constant 0 : index
    %17 = vector.load %arg5[%c0_12, %c0_13, %c0_14] : memref<1x128x128xf32, #tpu.memory_space<vmem>>, vector<1x128x128xf32>
    %18 = vector.shape_cast %17 : vector<1x128x128xf32> to vector<128x128xf32>
    %19 = vector.shape_cast %16 : vector<128x128xf32> to vector<1x128x128xf32>
    tpu.vector_store %arg5[%c0_12, %c0_13, %c0_14], %19 {strides = array<i32>} : memref<1x128x128xf32, #tpu.memory_space<vmem>>, vector<1x128x128xf32>,
    return
  }
  func.func @transform_0(%arg0: i32) -> (i32, i32, i32) {
    %c0_i32 = arith.constant 0 : i32
    %c0_i32_0 = arith.constant 0 : i32
    %c0_i32_1 = arith.constant 0 : i32
    return %arg0, %c0_i32, %c0_i32_0 : i32, i32, i32
  }
  func.func @transform_1(%arg0: i32) -> (i32, i32, i32) {
    %c0_i32 = arith.constant 0 : i32
    %c0_i32_0 = arith.constant 0 : i32
    %c0_i32_1 = arith.constant 0 : i32
    return %arg0, %c0_i32, %c0_i32_0 : i32, i32, i32
  }
  func.func @transform_2(%arg0: i32) -> (i32, i32) {
    %c0_i32 = arith.constant 0 : i32
    %c0_i32_0 = arith.constant 0 : i32
    %c0_i32_1 = arith.constant 0 : i32
    return %c0_i32, %c0_i32_0 : i32, i32
  }
  func.func @transform_3(%arg0: i32) -> (i32, i32) {
    %c0_i32 = arith.constant 0 : i32
    %c0_i32_0 = arith.constant 0 : i32
    %c0_i32_1 = arith.constant 0 : i32
    return %c0_i32, %c0_i32_0 : i32, i32
  }
  func.func @transform_4(%arg0: i32) -> (i32, i32, i32) {
    %c0_i32 = arith.constant 0 : i32
    %c0_i32_0 = arith.constant 0 : i32
    %c0_i32_1 = arith.constant 0 : i32
    return %arg0, %c0_i32, %c0_i32_0 : i32, i32, i32
  }
}

</mosaic_0001>

<llo_original>
// kernel: tpu_custom_call.1
$region0: #{tpu_custom_call.1}
  #allocation0 [shape = 'u32[]', space=smem, size = 0x4, offset = 0x4, fixed_abs, tag = 'smem constant byte address 0x4 - core index']
  #allocation1 [shape = 'u32[144,128]{1,0:T(1,128)}', space=vmem, size = 0x12000, scoped, tag = 'internal scratch']
  %s0 = inlined_call_operand.hbm [shape: bf16[2,128,128], index: 0, kind: input, shape index: {}]
  %s1 = inlined_call_operand.hbm [shape: bf16[2,128,128], index: 1, kind: input, shape index: {}]
  %s2 = inlined_call_operand.hbm [shape: bf16[128,128], index: 2, kind: input, shape index: {}]
  %s3 = inlined_call_operand.vmem [shape: f32[1,128], index: 3, kind: input, shape index: {}]
  %s4 = inlined_call_operand.hbm [shape: f32[2,128,128], index: 4, kind: output, shape index: {}]
  %s5 = sld [smem:[#allocation0]]
  $region61: #{tpu_custom_call.1} parent=0
    _
  %s7 = ssub.s32 1, %s5
  %s8 = scalar_select 0, %s7, %s5
  $region1: #{tpu_custom_call.1} parent=0
    #allocation2 [shape = 'u8[65536]{0}', space=vmem, size = 0x10000, scoped, tag = 'input window, operand 0']
    #allocation3 [shape = 's32[2]{0}', space=sflag, size = 0x8, scoped, tag = 'scoped memory for tpu_custom_call.1']
    #allocation4 [shape = 's32[2]{0}', space=sflag, size = 0x8, scoped, tag = 'scoped memory for tpu_custom_call.1']
    #allocation5 [shape = 'u8[65536]{0}', space=vmem, size = 0x10000, scoped, tag = 'input window, operand 1']
    #allocation6 [shape = 's32[2]{0}', space=sflag, size = 0x8, scoped, tag = 'scoped memory for tpu_custom_call.1']
    #allocation7 [shape = 'u8[32768]{0}', space=vmem, size = 0x8000, scoped, tag = 'input window, operand 2, single buffered']
    #allocation8 [shape = 'u8[131072]{0}', space=vmem, size = 0x20000, scoped, tag = 'output window, operand 0']
    %9 = vsyncpa [#allocation3], 0
    %s10 = scalar_lea.sflag [#allocation3], 1
    %11 = vsyncpa %s10, 0
    %12 = vsyncpa [#allocation6], 0
    %s13 = scalar_lea.sflag [#allocation6], 1
    %14 = vsyncpa %s13, 0
    %15 = vsyncpa [#allocation4], 0
    %s16 = scalar_lea.sflag [#allocation4], 1
    %17 = vsyncpa %s16, 0
    loop: start=0, step=1, limit=4
    $region2: #{tpu_custom_call.1} parent=1 // loop_pre_header
      _
    $region3: #{tpu_custom_call.1} parent=1 // loop_header
      %s19 = sphi 0, %s23
      %p20 = scmp.ge.s32.totalorder %s19, 4
      %s29 = sphi 0, %s31
      %s32 = sphi 0, %s29
      %s33 = sphi 0, %s32
      %s49 = sphi 0, %s33
      %s55 = sphi 0, %s57
      %s58 = sphi 0, %s55
      %s59 = sphi 0, %s58
      %s75 = sphi 0, %s59
      %s79 = sphi 0, %s79
      %s81 = sphi 0, %s79
      %s82 = sphi 0, %s81
      %s96 = sphi 0, %s82
      %s100 = sphi 0, %s100
      %s102 = sphi 0, %s100
      %s103 = sphi 0, %s102
      %s117 = sphi 0, %s103
      %s123 = sphi 0, %s125
      %s126 = sphi 0, %s123
      %s127 = sphi 0, %s126
      %s143 = sphi 0, %s127
    $region4: #{tpu_custom_call.1} parent=1 // loop_header_branch
      %22 = sbr.rel (%p20) target = $region8
    $region5: #{tpu_custom_call.1} parent=1 // loop_body
      %s24 = ssub.s32 %s19, 1
      %s25 = ssub.s32 %s19, 2
      %s26 = sadd.s32 %s19, 1
      %s27 = ssub.s32 %s19, %s26
      %p28 = scmp.eq.s32.totalorder %s27, 0
      %s30 = sadd.s32 %s29, 1
      %s31 = scalar_select %p28, %s29, %s30
      %p34 = pneg %p28
      %p35 = scmp.eq.s32.totalorder %s19, 1
      %p36 = por %p34, %p35
      %p37 = scmp.ne.s32.totalorder %s29, %s32
      %p38 = scmp.eq.s32.totalorder %s19, 0
      %p39 = por %p37, %p38
      %p40 = scmp.ne.s32.totalorder %s29, %s32
      %p41 = scmp.eq.s32.totalorder %s24, 1
      %p42 = por %p40, %p41
      %p43 = scmp.ne.s32.totalorder %s32, %s33
      %p44 = scmp.eq.s32.totalorder %s24, 0
      %p45 = por %p43, %p44
      %p46 = scmp.ne.s32.totalorder %s32, %s33
      %p47 = scmp.eq.s32.totalorder %s25, 1
      %p48 = por %p46, %p47
      %p50 = scmp.ne.s32.totalorder %s33, %s49
      %p51 = scmp.eq.s32.totalorder %s25, 0
      %p52 = por %p50, %p51
      %s53 = ssub.s32 %s19, %s26
      %p54 = scmp.eq.s32.totalorder %s53, 0
      %s56 = sadd.s32 %s55, 1
      %s57 = scalar_select %p54, %s55, %s56
      %p60 = pneg %p54
      %p61 = scmp.eq.s32.totalorder %s19, 1
      %p62 = por %p60, %p61
      %p63 = scmp.ne.s32.totalorder %s55, %s58
      %p64 = scmp.eq.s32.totalorder %s19, 0
      %p65 = por %p63, %p64
      %p66 = scmp.ne.s32.totalorder %s55, %s58
      %p67 = scmp.eq.s32.totalorder %s24, 1
      %p68 = por %p66, %p67
      %p69 = scmp.ne.s32.totalorder %s58, %s59
      %p70 = scmp.eq.s32.totalorder %s24, 0
      %p71 = por %p69, %p70
      %p72 = scmp.ne.s32.totalorder %s58, %s59
      %p73 = scmp.eq.s32.totalorder %s25, 1
      %p74 = por %p72, %p73
      %p76 = scmp.ne.s32.totalorder %s59, %s75
      %p77 = scmp.eq.s32.totalorder %s25, 0
      %p78 = por %p76, %p77
      %s80 = sadd.s32 %s79, 1
      %p83 = scmp.eq.s32.totalorder %s19, 1
      %p84 = scmp.ne.s32.totalorder %s79, %s81
      %p85 = scmp.eq.s32.totalorder %s19, 0
      %p86 = por %p84, %p85
      %p87 = scmp.ne.s32.totalorder %s79, %s81
      %p88 = scmp.eq.s32.totalorder %s24, 1
      %p89 = por %p87, %p88
      %p90 = scmp.ne.s32.totalorder %s81, %s82
      %p91 = scmp.eq.s32.totalorder %s24, 0
      %p92 = por %p90, %p91
      %p93 = scmp.ne.s32.totalorder %s81, %s82
      %p94 = scmp.eq.s32.totalorder %s25, 1
      %p95 = por %p93, %p94
      %p97 = scmp.ne.s32.totalorder %s82, %s96
      %p98 = scmp.eq.s32.totalorder %s25, 0
      %p99 = por %p97, %p98
      %s101 = sadd.s32 %s100, 1
      %p104 = scmp.eq.s32.totalorder %s19, 1
      %p105 = scmp.ne.s32.totalorder %s100, %s102
      %p106 = scmp.eq.s32.totalorder %s19, 0
      %p107 = por %p105, %p106
      %p108 = scmp.ne.s32.totalorder %s100, %s102
      %p109 = scmp.eq.s32.totalorder %s24, 1
      %p110 = por %p108, %p109
      %p111 = scmp.ne.s32.totalorder %s102, %s103
      %p112 = scmp.eq.s32.totalorder %s24, 0
      %p113 = por %p111, %p112
      %p114 = scmp.ne.s32.totalorder %s102, %s103
      %p115 = scmp.eq.s32.totalorder %s25, 1
      %p116 = por %p114, %p115
      %p118 = scmp.ne.s32.totalorder %s103, %s117
      %p119 = scmp.eq.s32.totalorder %s25, 0
      %p120 = por %p118, %p119
      %s121 = ssub.s32 %s19, %s26
      %p122 = scmp.eq.s32.totalorder %s121, 0
      %s124 = sadd.s32 %s123, 1
      %s125 = scalar_select %p122, %s123, %s124
      %p128 = pneg %p122
      %p129 = scmp.eq.s32.totalorder %s19, 1
      %p130 = por %p128, %p129
      %p131 = scmp.ne.s32.totalorder %s123, %s126
      %p132 = scmp.eq.s32.totalorder %s19, 0
      %p133 = por %p131, %p132
      %p134 = scmp.ne.s32.totalorder %s123, %s126
      %p135 = scmp.eq.s32.totalorder %s24, 1
      %p136 = por %p134, %p135
      %p137 = scmp.ne.s32.totalorder %s126, %s127
      %p138 = scmp.eq.s32.totalorder %s24, 0
      %p139 = por %p137, %p138
      %p140 = scmp.ne.s32.totalorder %s126, %s127
      %p141 = scmp.eq.s32.totalorder %s25, 1
      %p142 = por %p140, %p141
      %p144 = scmp.ne.s32.totalorder %s127, %s143
      %p145 = scmp.eq.s32.totalorder %s25, 0
      %p146 = por %p144, %p145
      %p147 = scmp.le.s32.totalorder 1, %s19
      %p148 = scmp.lt.s32.totalorder %s19, 3
      %p149 = pnand %p147, %p148
      %p150 = pneg %p149
      // Predicated region
      $region9: #{tpu_custom_call.1} parent=5 // pred_check
        _
      $region10: #{tpu_custom_call.1} parent=5 // pred_check_branch
        %152 = sbr.rel (%p149) target = $region12
      $region11: #{tpu_custom_call.1} parent=5 // pred_region
        %s153 = ssub.s32 %s19, 1
        // Predicated region
        $region13: #{tpu_custom_call.1} parent=11 // pred_check
          %p154 = pneg %p92
        $region14: #{tpu_custom_call.1} parent=11 // pred_check_branch
          %156 = sbr.rel (%p154) target = $region16
        $region15: #{tpu_custom_call.1} parent=11 // pred_region
          %s158 = ssub.s32 1024, 1024
          %159 = vsyncadd [#allocation6], %s158
          %s160 = sshll.u32 [#allocation7], 4
          %s161 = int_to_ptr.vmem [resolvable:$true] %s160
          %166 = dma.hbm_to_vmem [thread:$0]  %s2, 1024, %s161, [#allocation6], 64, 64, 4
        $region16: #{tpu_custom_call.1} parent=11 // pred_fallthru
          _
        // Predicated region
        $region17: #{tpu_custom_call.1} parent=11 // pred_check
          %p167 = pneg %p113
        $region18: #{tpu_custom_call.1} parent=11 // pred_check_branch
          %169 = sbr.rel (%p167) target = $region20
        $region19: #{tpu_custom_call.1} parent=11 // pred_region
          _
        $region20: #{tpu_custom_call.1} parent=11 // pred_fallthru
          _
      $region12: #{tpu_custom_call.1} parent=5 // pred_fallthru
        _
      %p170 = scmp.lt.s32.totalorder %s19, 2
      // Predicated region
      $region21: #{tpu_custom_call.1} parent=5 // pred_check
        %p171 = pneg %p170
      $region22: #{tpu_custom_call.1} parent=5 // pred_check_branch
        %173 = sbr.rel (%p171) target = $region24
      $region23: #{tpu_custom_call.1} parent=5 // pred_region
        // Predicated region
        $region25: #{tpu_custom_call.1} parent=23 // pred_check
          %p174 = pneg %p39
        $region26: #{tpu_custom_call.1} parent=23 // pred_check_branch
          %176 = sbr.rel (%p174) target = $region28
        $region27: #{tpu_custom_call.1} parent=23 // pred_region
          %s177 = sand.u32 %s29, 1
          %s178 = scalar_lea.sflag [#allocation3], %s177
          %s179 = sand.u32 %s29, 1
          %s180 = smul.addr %s179, 64
          %s181 = scalar_lea.vmem [#allocation2], %s180
          %s183 = ssub.s32 1024, 1024
          %184 = vsyncadd %s178, %s183
          %s185 = smul.addr %s19, 16
          %s186 = smul.addr %s185, 64
          %s187 = scalar_lea.hbm %s0, %s186
          %s188 = sshll.u32 %s181, 4
          %s189 = int_to_ptr.vmem [resolvable:$true] %s188
          %194 = dma.hbm_to_vmem [thread:$0]  %s187, 1024, %s189, %s178, 64, 64, 4
        $region28: #{tpu_custom_call.1} parent=23 // pred_fallthru
          _
        // Predicated region
        $region29: #{tpu_custom_call.1} parent=23 // pred_check
          %p195 = pneg %p65
        $region30: #{tpu_custom_call.1} parent=23 // pred_check_branch
          %197 = sbr.rel (%p195) target = $region32
        $region31: #{tpu_custom_call.1} parent=23 // pred_region
          %s198 = sand.u32 %s19, 1
          %s199 = scalar_lea.sflag [#allocation6], %s198
          %s200 = sand.u32 %s55, 1
          %s201 = smul.addr %s200, 64
          %s202 = scalar_lea.vmem [#allocation5], %s201
          %s204 = ssub.s32 1024, 1024
          %205 = vsyncadd %s199, %s204
          %s206 = smul.addr %s19, 16
          %s207 = smul.addr %s206, 64
          %s208 = scalar_lea.hbm %s1, %s207
          %s209 = sshll.u32 %s202, 4
          %s210 = int_to_ptr.vmem [resolvable:$true] %s209
          %215 = dma.hbm_to_vmem [thread:$0]  %s208, 1024, %s210, %s199, 64, 64, 4
        $region32: #{tpu_custom_call.1} parent=23 // pred_fallthru
          _
      $region24: #{tpu_custom_call.1} parent=5 // pred_fallthru
        _
      %p216 = scmp.le.s32.totalorder 1, %s19
      %p217 = scmp.lt.s32.totalorder %s19, 3
      %p218 = pnand %p216, %p217
      %p219 = pneg %p218
      // Predicated region
      $region33: #{tpu_custom_call.1} parent=5 // pred_check
        _
      $region34: #{tpu_custom_call.1} parent=5 // pred_check_branch
        %221 = sbr.rel (%p218) target = $region36
      $region35: #{tpu_custom_call.1} parent=5 // pred_region
        %s222 = ssub.s32 %s19, 1
        %s223 = sand.u32 %s32, 1
        %s224 = scalar_lea.sflag [#allocation3], %s223
        %s225 = sand.u32 %s32, 1
        %s226 = smul.addr %s225, 64
        %s227 = scalar_lea.vmem [#allocation2], %s226
        // Predicated region
        $region37: #{tpu_custom_call.1} parent=35 // pred_check
          %p228 = pneg %p45
        $region38: #{tpu_custom_call.1} parent=35 // pred_check_branch
          %230 = sbr.rel (%p228) target = $region40
        $region39: #{tpu_custom_call.1} parent=35 // pred_region
          %231 = dma.done %s224, 1024
        $region40: #{tpu_custom_call.1} parent=35 // pred_fallthru
          _
        %s232 = sand.u32 %s24, 1
        %s233 = scalar_lea.sflag [#allocation6], %s232
        %s234 = sand.u32 %s58, 1
        %s235 = smul.addr %s234, 64
        %s236 = scalar_lea.vmem [#allocation5], %s235
        // Predicated region
        $region41: #{tpu_custom_call.1} parent=35 // pred_check
          %p237 = pneg %p71
        $region42: #{tpu_custom_call.1} parent=35 // pred_check_branch
          %239 = sbr.rel (%p237) target = $region44
        $region43: #{tpu_custom_call.1} parent=35 // pred_region
          %240 = dma.done %s233, 1024
        $region44: #{tpu_custom_call.1} parent=35 // pred_fallthru
          _
        // Predicated region
        $region45: #{tpu_custom_call.1} parent=35 // pred_check
          %p241 = pneg %p92
        $region46: #{tpu_custom_call.1} parent=35 // pred_check_branch
          %243 = sbr.rel (%p241) target = $region48
        $region47: #{tpu_custom_call.1} parent=35 // pred_region
          %244 = dma.done [#allocation6], 1024
        $region48: #{tpu_custom_call.1} parent=35 // pred_fallthru
          _
        %s245 = sand.u32 %s32, 1
        %s246 = scalar_lea.sflag [#allocation3], %s245
        %s247 = sand.u32 %s32, 1
        %s248 = smul.addr %s247, 64
        %s249 = scalar_lea.vmem [#allocation2], %s248
        %p250 = pneg %p45
        %p251 = pneg %p42
        %s252 = sand.u32 %s24, 1
        %s253 = scalar_lea.sflag [#allocation6], %s252
        %s254 = sand.u32 %s58, 1
        %s255 = smul.addr %s254, 64
        %s256 = scalar_lea.vmem [#allocation5], %s255
        %p257 = pneg %p71
        %p258 = pneg %p68
        %p259 = pneg %p92
        %p260 = pneg %p89
        %p261 = pneg %p113
        %p262 = pneg %p110
        %p263 = pneg %p139
        %p264 = pneg %p136
        %s265 = sand.u32 %s126, 1
        %s266 = scalar_lea.sflag [#allocation4], %s265
        %s267 = sand.u32 %s126, 1
        %s268 = smul.addr %s267, 128
        %s269 = scalar_lea.vmem [#allocation8], %s268
        %v271 = vld [vmem:[%s227] sm:$0xf]
        %v272 = vld [vmem:[%s227 + $0x4] sm:$0xf]
        %v273 = vld [vmem:[%s227 + $0x8] sm:$0xf]
        %v274 = vld [vmem:[%s227 + $0xc] sm:$0xf]
        %v275 = vld [vmem:[%s227 + $0x10] sm:$0xf]
        %v276 = vld [vmem:[%s227 + $0x14] sm:$0xf]
        %v277 = vld [vmem:[%s227 + $0x18] sm:$0xf]
        %v278 = vld [vmem:[%s227 + $0x1c] sm:$0xf]
        %v279 = vld [vmem:[%s227 + $0x20] sm:$0xf]
        %v280 = vld [vmem:[%s227 + $0x24] sm:$0xf]
        %v281 = vld [vmem:[%s227 + $0x28] sm:$0xf]
        %v282 = vld [vmem:[%s227 + $0x2c] sm:$0xf]
        %v283 = vld [vmem:[%s227 + $0x30] sm:$0xf]
        %v284 = vld [vmem:[%s227 + $0x34] sm:$0xf]
        %v285 = vld [vmem:[%s227 + $0x38] sm:$0xf]
        %v286 = vld [vmem:[%s227 + $0x3c] sm:$0xf]
        %v287 = vld [vmem:[%s236] sm:$0xf]
        %v288 = vld [vmem:[%s236 + $0x4] sm:$0xf]
        %v289 = vld [vmem:[%s236 + $0x8] sm:$0xf]
        %v290 = vld [vmem:[%s236 + $0xc] sm:$0xf]
        %v291 = vld [vmem:[%s236 + $0x10] sm:$0xf]
        %v292 = vld [vmem:[%s236 + $0x14] sm:$0xf]
        %v293 = vld [vmem:[%s236 + $0x18] sm:$0xf]
        %v294 = vld [vmem:[%s236 + $0x1c] sm:$0xf]
        %v295 = vld [vmem:[%s236 + $0x20] sm:$0xf]
        %v296 = vld [vmem:[%s236 + $0x24] sm:$0xf]
        %v297 = vld [vmem:[%s236 + $0x28] sm:$0xf]
        %v298 = vld [vmem:[%s236 + $0x2c] sm:$0xf]
        %v299 = vld [vmem:[%s236 + $0x30] sm:$0xf]
        %v300 = vld [vmem:[%s236 + $0x34] sm:$0xf]
        %v301 = vld [vmem:[%s236 + $0x38] sm:$0xf]
        %v302 = vld [vmem:[%s236 + $0x3c] sm:$0xf]
        %v319 = vunpack.c.l.b16 %v271
        %v320 = vunpack.c.l.b16 %v272
        %v321 = vunpack.c.l.b16 %v273
        %v322 = vunpack.c.l.b16 %v274
        %v323 = vunpack.c.l.b16 %v275
        %v324 = vunpack.c.l.b16 %v276
        %v325 = vunpack.c.l.b16 %v277
        %v326 = vunpack.c.l.b16 %v278
        %v327 = vunpack.c.l.b16 %v279
        %v328 = vunpack.c.l.b16 %v280
        %v329 = vunpack.c.l.b16 %v281
        %v330 = vunpack.c.l.b16 %v282
        %v331 = vunpack.c.l.b16 %v283
        %v332 = vunpack.c.l.b16 %v284
        %v333 = vunpack.c.l.b16 %v285
        %v334 = vunpack.c.l.b16 %v286
        %v335 = vpack.c.b16 %v320, %v319
        %v336 = vpack.c.b16 %v322, %v321
        %v337 = vpack.c.b16 %v324, %v323
        %v338 = vpack.c.b16 %v326, %v325
        %v339 = vpack.c.b16 %v328, %v327
        %v340 = vpack.c.b16 %v330, %v329
        %v341 = vpack.c.b16 %v332, %v331
        %v342 = vpack.c.b16 %v334, %v333
        %v367 = vunpack.c.l.b16 %v287
        %v368 = vunpack.c.l.b16 %v288
        %v369 = vunpack.c.l.b16 %v289
        %v370 = vunpack.c.l.b16 %v290
        %v371 = vunpack.c.l.b16 %v291
        %v372 = vunpack.c.l.b16 %v292
        %v373 = vunpack.c.l.b16 %v293
        %v374 = vunpack.c.l.b16 %v294
        %v375 = vunpack.c.l.b16 %v295
        %v376 = vunpack.c.l.b16 %v296
        %v377 = vunpack.c.l.b16 %v297
        %v378 = vunpack.c.l.b16 %v298
        %v379 = vunpack.c.l.b16 %v299
        %v380 = vunpack.c.l.b16 %v300
        %v381 = vunpack.c.l.b16 %v301
        %v382 = vunpack.c.l.b16 %v302
        %v383 = vpack.c.b16 %v368, %v367
        %v384 = vpack.c.b16 %v370, %v369
        %v385 = vpack.c.b16 %v372, %v371
        %v386 = vpack.c.b16 %v374, %v373
        %v387 = vpack.c.b16 %v376, %v375
        %v388 = vpack.c.b16 %v378, %v377
        %v389 = vpack.c.b16 %v380, %v379
        %v390 = vpack.c.b16 %v382, %v381
        %399 = vmatprep.subr.bf16.mxu0 0
        %400 = vmatpush1.bf16.msra.mxu0 %v383
        %401 = vmatprep.subr.bf16.mxu0 0
        %402 = vmatpush1.bf16.msra.mxu0 %v384
        %403 = vmatprep.subr.bf16.mxu0 0
        %404 = vmatpush1.bf16.msra.mxu0 %v385
        %405 = vmatprep.subr.bf16.mxu0 0
        %406 = vmatpush1.bf16.msra.mxu0 %v386
        %407 = vmatprep.subr.bf16.mxu0 0
        %408 = vmatpush1.bf16.msra.mxu0 %v387
        %409 = vmatprep.subr.bf16.mxu0 0
        %410 = vmatpush1.bf16.msra.mxu0 %v388
        %411 = vmatprep.subr.bf16.mxu0 0
        %412 = vmatpush1.bf16.msra.mxu0 %v389
        %413 = vmatprep.subr.bf16.mxu0 0
        %414 = vmatpush1.bf16.msra.mxu0 %v390
        %415 = vmatprep.subr.bf16.mxu0 0
        %416 = vmatpush1.bf16.msra.mxu0 0
        %417 = vmatprep.subr.bf16.mxu0 0
        %418 = vmatpush1.bf16.msra.mxu0 0
        %419 = vmatprep.subr.bf16.mxu0 0
        %420 = vmatpush1.bf16.msra.mxu0 0
        %421 = vmatprep.subr.bf16.mxu0 0
        %422 = vmatpush1.bf16.msra.mxu0 0
        %423 = vmatprep.subr.bf16.mxu0 0
        %424 = vmatpush1.bf16.msra.mxu0 0
        %425 = vmatprep.subr.bf16.mxu0 0
        %426 = vmatpush1.bf16.msra.mxu0 0
        %427 = vmatprep.subr.bf16.mxu0 0
        %428 = vmatpush1.bf16.msra.mxu0 0
        %429 = vmatprep.subr.bf16.mxu0 0
        %430 = vmatpush1.bf16.msra.mxu0 0
        %431 = vmatprep.mubr.bf16.mxu0 0
        %432 = vmatmul.mubr.bf16.gmra.mrb[0].mxu0 %v335
        %v433 = vpop.f32.mrb[0].mxu0
        %v434 = vadd.f32 0.0, %v433
        %v435 = vpop.f32.mrb[0].mxu0
        %v436 = vpop.f32.mrb[0].mxu0
        %v437 = vadd.f32 0.0, %v436
        %v438 = vpop.f32.mrb[0].mxu0
        %439 = vmatprep.mubr.bf16.mxu0 0
        %440 = vmatmul.mubr.bf16.gmra.mrb[0].mxu0 %v336
        %v441 = vpop.f32.mrb[0].mxu0
        %v442 = vadd.f32 0.0, %v441
        %v443 = vpop.f32.mrb[0].mxu0
        %v444 = vpop.f32.mrb[0].mxu0
        %v445 = vadd.f32 0.0, %v444
        %v446 = vpop.f32.mrb[0].mxu0
        %447 = vmatprep.mubr.bf16.mxu0 0
        %448 = vmatmul.mubr.bf16.gmra.mrb[0].mxu0 %v337
        %v449 = vpop.f32.mrb[0].mxu0
        %v450 = vadd.f32 0.0, %v449
        %v451 = vpop.f32.mrb[0].mxu0
        %v452 = vpop.f32.mrb[0].mxu0
        %v453 = vadd.f32 0.0, %v452
        %v454 = vpop.f32.mrb[0].mxu0
        %455 = vmatprep.mubr.bf16.mxu0 0
        %456 = vmatmul.mubr.bf16.gmra.mrb[0].mxu0 %v338
        %v457 = vpop.f32.mrb[0].mxu0
        %v458 = vadd.f32 0.0, %v457
        %v459 = vpop.f32.mrb[0].mxu0
        %v460 = vpop.f32.mrb[0].mxu0
        %v461 = vadd.f32 0.0, %v460
        %v462 = vpop.f32.mrb[0].mxu0
        %463 = vmatprep.mubr.bf16.mxu0 0
        %464 = vmatmul.mubr.bf16.gmra.mrb[0].mxu0 %v339
        %v465 = vpop.f32.mrb[0].mxu0
        %v466 = vadd.f32 0.0, %v465
        %v467 = vpop.f32.mrb[0].mxu0
        %v468 = vpop.f32.mrb[0].mxu0
        %v469 = vadd.f32 0.0, %v468
        %v470 = vpop.f32.mrb[0].mxu0
        %471 = vmatprep.mubr.bf16.mxu0 0
        %472 = vmatmul.mubr.bf16.gmra.mrb[0].mxu0 %v340
        %v473 = vpop.f32.mrb[0].mxu0
        %v474 = vadd.f32 0.0, %v473
        %v475 = vpop.f32.mrb[0].mxu0
        %v476 = vpop.f32.mrb[0].mxu0
        %v477 = vadd.f32 0.0, %v476
        %v478 = vpop.f32.mrb[0].mxu0
        %479 = vmatprep.mubr.bf16.mxu0 0
        %480 = vmatmul.mubr.bf16.gmra.mrb[0].mxu0 %v341
        %v481 = vpop.f32.mrb[0].mxu0
        %v482 = vadd.f32 0.0, %v481
        %v483 = vpop.f32.mrb[0].mxu0
        %v484 = vpop.f32.mrb[0].mxu0
        %v485 = vadd.f32 0.0, %v484
        %v486 = vpop.f32.mrb[0].mxu0
        %487 = vmatprep.mubr.bf16.mxu0 0
        %488 = vmatmul.mubr.bf16.gmra.mrb[0].mxu0 %v342
        %v489 = vpop.f32.mrb[0].mxu0
        %v490 = vadd.f32 0.0, %v489
        %v491 = vpop.f32.mrb[0].mxu0
        %v492 = vpop.f32.mrb[0].mxu0
        %v493 = vadd.f32 0.0, %v492
        %v494 = vpop.f32.mrb[0].mxu0
        %495 = vdwg.mxu0
        %v496 = vpack.c.bf16 %v437, %v434
        %v497 = vpack.c.bf16 %v445, %v442
        %v498 = vpack.c.bf16 %v453, %v450
        %v499 = vpack.c.bf16 %v461, %v458
        %v500 = vpack.c.bf16 %v469, %v466
        %v501 = vpack.c.bf16 %v477, %v474
        %v502 = vpack.c.bf16 %v485, %v482
        %v503 = vpack.c.bf16 %v493, %v490
        %504 = vmatprep.subr.bf16.mxu0 0
        %505 = vmatpush1.bf16.msra.mxu0 %v496
        %506 = vmatprep.subr.bf16.mxu0 0
        %507 = vmatpush1.bf16.msra.mxu0 %v497
        %508 = vmatprep.subr.bf16.mxu0 0
        %509 = vmatpush1.bf16.msra.mxu0 %v498
        %510 = vmatprep.subr.bf16.mxu0 0
        %511 = vmatpush1.bf16.msra.mxu0 %v499
        %512 = vmatprep.subr.bf16.mxu0 0
        %513 = vmatpush1.bf16.msra.mxu0 %v500
        %514 = vmatprep.subr.bf16.mxu0 0
        %515 = vmatpush1.bf16.msra.mxu0 %v501
        %516 = vmatprep.subr.bf16.mxu0 0
        %517 = vmatpush1.bf16.msra.mxu0 %v502
        %518 = vmatprep.subr.bf16.mxu0 0
        %519 = vmatpush1.bf16.msra.mxu0 %v503
        %520 = vmatprep.subr.bf16.mxu0 0
        %521 = vmatpush1.bf16.msra.mxu0 0
        %522 = vmatprep.subr.bf16.mxu0 0
        %523 = vmatpush1.bf16.msra.mxu0 0
        %524 = vmatprep.subr.bf16.mxu0 0
        %525 = vmatpush1.bf16.msra.mxu0 0
        %526 = vmatprep.subr.bf16.mxu0 0
        %527 = vmatpush1.bf16.msra.mxu0 0
        %528 = vmatprep.subr.bf16.mxu0 0
        %529 = vmatpush1.bf16.msra.mxu0 0
        %530 = vmatprep.subr.bf16.mxu0 0
        %531 = vmatpush1.bf16.msra.mxu0 0
        %532 = vmatprep.subr.bf16.mxu0 0
        %533 = vmatpush1.bf16.msra.mxu0 0
        %534 = vmatprep.subr.bf16.mxu0 0
        %535 = vmatpush1.bf16.msra.mxu0 0
        %536 = vmatprep.mubr.bf16.mxu0 0
        %537 = vmatmul.mubr.bf16.gmra.mrb[0].mxu0 %v335
        %v538 = vpop.f32.mrb[0].mxu0
        %v539 = vadd.f32 0.0, %v538
        %v540 = vpop.f32.mrb[0].mxu0
        %v541 = vpop.f32.mrb[0].mxu0
        %v542 = vadd.f32 0.0, %v541
        %v543 = vpop.f32.mrb[0].mxu0
        %544 = vmatprep.mubr.bf16.mxu0 0
        %545 = vmatmul.mubr.bf16.gmra.mrb[0].mxu0 %v336
        %v546 = vpop.f32.mrb[0].mxu0
        %v547 = vadd.f32 0.0, %v546
        %v548 = vpop.f32.mrb[0].mxu0
        %v549 = vpop.f32.mrb[0].mxu0
        %v550 = vadd.f32 0.0, %v549
        %v551 = vpop.f32.mrb[0].mxu0
        %552 = vmatprep.mubr.bf16.mxu0 0
        %553 = vmatmul.mubr.bf16.gmra.mrb[0].mxu0 %v337
        %v554 = vpop.f32.mrb[0].mxu0
        %v555 = vadd.f32 0.0, %v554
        %v556 = vpop.f32.mrb[0].mxu0
        %v557 = vpop.f32.mrb[0].mxu0
        %v558 = vadd.f32 0.0, %v557
        %v559 = vpop.f32.mrb[0].mxu0
        %560 = vmatprep.mubr.bf16.mxu0 0
        %561 = vmatmul.mubr.bf16.gmra.mrb[0].mxu0 %v338
        %v562 = vpop.f32.mrb[0].mxu0
        %v563 = vadd.f32 0.0, %v562
        %v564 = vpop.f32.mrb[0].mxu0
        %v565 = vpop.f32.mrb[0].mxu0
        %v566 = vadd.f32 0.0, %v565
        %v567 = vpop.f32.mrb[0].mxu0
        %568 = vmatprep.mubr.bf16.mxu0 0
        %569 = vmatmul.mubr.bf16.gmra.mrb[0].mxu0 %v339
        %v570 = vpop.f32.mrb[0].mxu0
        %v571 = vadd.f32 0.0, %v570
        %v572 = vpop.f32.mrb[0].mxu0
        %v573 = vpop.f32.mrb[0].mxu0
        %v574 = vadd.f32 0.0, %v573
        %v575 = vpop.f32.mrb[0].mxu0
        %576 = vmatprep.mubr.bf16.mxu0 0
        %577 = vmatmul.mubr.bf16.gmra.mrb[0].mxu0 %v340
        %v578 = vpop.f32.mrb[0].mxu0
        %v579 = vadd.f32 0.0, %v578
        %v580 = vpop.f32.mrb[0].mxu0
        %v581 = vpop.f32.mrb[0].mxu0
        %v582 = vadd.f32 0.0, %v581
        %v583 = vpop.f32.mrb[0].mxu0
        %584 = vmatprep.mubr.bf16.mxu0 0
        %585 = vmatmul.mubr.bf16.gmra.mrb[0].mxu0 %v341
        %v586 = vpop.f32.mrb[0].mxu0
        %v587 = vadd.f32 0.0, %v586
        %v588 = vpop.f32.mrb[0].mxu0
        %v589 = vpop.f32.mrb[0].mxu0
        %v590 = vadd.f32 0.0, %v589
        %v591 = vpop.f32.mrb[0].mxu0
        %592 = vmatprep.mubr.bf16.mxu0 0
        %593 = vmatmul.mubr.bf16.gmra.mrb[0].mxu0 %v342
        %v594 = vpop.f32.mrb[0].mxu0
        %v595 = vadd.f32 0.0, %v594
        %v596 = vpop.f32.mrb[0].mxu0
        %v597 = vpop.f32.mrb[0].mxu0
        %v598 = vadd.f32 0.0, %v597
        %v599 = vpop.f32.mrb[0].mxu0
        %600 = vdwg.mxu0
        %v601 = vpack.c.bf16 %v542, %v539
        %v602 = vpack.c.bf16 %v550, %v547
        %v603 = vpack.c.bf16 %v558, %v555
        %v604 = vpack.c.bf16 %v566, %v563
        %v605 = vpack.c.bf16 %v574, %v571
        %v606 = vpack.c.bf16 %v582, %v579
        %v607 = vpack.c.bf16 %v590, %v587
        %v608 = vpack.c.bf16 %v598, %v595
        %609 = vmatprep.subr.bf16.mxu0 0
        %610 = vmatpush1.bf16.msra.mxu0 %v601
        %611 = vmatprep.subr.bf16.mxu0 0
        %612 = vmatpush1.bf16.msra.mxu0 %v602
        %613 = vmatprep.subr.bf16.mxu0 0
        %614 = vmatpush1.bf16.msra.mxu0 %v603
        %615 = vmatprep.subr.bf16.mxu0 0
        %616 = vmatpush1.bf16.msra.mxu0 %v604
        %617 = vmatprep.subr.bf16.mxu0 0
        %618 = vmatpush1.bf16.msra.mxu0 %v605
        %619 = vmatprep.subr.bf16.mxu0 0
        %620 = vmatpush1.bf16.msra.mxu0 %v606
        %621 = vmatprep.subr.bf16.mxu0 0
        %622 = vmatpush1.bf16.msra.mxu0 %v607
        %623 = vmatprep.subr.bf16.mxu0 0
        %624 = vmatpush1.bf16.msra.mxu0 %v608
        %625 = vmatprep.subr.bf16.mxu0 0
        %626 = vmatpush1.bf16.msra.mxu0 0
        %627 = vmatprep.subr.bf16.mxu0 0
        %628 = vmatpush1.bf16.msra.mxu0 0
        %629 = vmatprep.subr.bf16.mxu0 0
        %630 = vmatpush1.bf16.msra.mxu0 0
        %631 = vmatprep.subr.bf16.mxu0 0
        %632 = vmatpush1.bf16.msra.mxu0 0
        %633 = vmatprep.subr.bf16.mxu0 0
        %634 = vmatpush1.bf16.msra.mxu0 0
        %635 = vmatprep.subr.bf16.mxu0 0
        %636 = vmatpush1.bf16.msra.mxu0 0
        %637 = vmatprep.subr.bf16.mxu0 0
        %638 = vmatpush1.bf16.msra.mxu0 0
        %639 = vmatprep.subr.bf16.mxu0 0
        %640 = vmatpush1.bf16.msra.mxu0 0
        %641 = vmatprep.mubr.bf16.mxu0 0
        %642 = vmatmul.mubr.bf16.gmra.mrb[0].mxu0 %v335
        %v643 = vpop.f32.mrb[0].mxu0
        %v644 = vadd.f32 0.0, %v643
        %v645 = vpop.f32.mrb[0].mxu0
        %v646 = vpop.f32.mrb[0].mxu0
        %v647 = vadd.f32 0.0, %v646
        %v648 = vpop.f32.mrb[0].mxu0
        %649 = vmatprep.mubr.bf16.mxu0 0
        %650 = vmatmul.mubr.bf16.gmra.mrb[0].mxu0 %v336
        %v651 = vpop.f32.mrb[0].mxu0
        %v652 = vadd.f32 0.0, %v651
        %v653 = vpop.f32.mrb[0].mxu0
        %v654 = vpop.f32.mrb[0].mxu0
        %v655 = vadd.f32 0.0, %v654
        %v656 = vpop.f32.mrb[0].mxu0
        %657 = vmatprep.mubr.bf16.mxu0 0
        %658 = vmatmul.mubr.bf16.gmra.mrb[0].mxu0 %v337
        %v659 = vpop.f32.mrb[0].mxu0
        %v660 = vadd.f32 0.0, %v659
        %v661 = vpop.f32.mrb[0].mxu0
        %v662 = vpop.f32.mrb[0].mxu0
        %v663 = vadd.f32 0.0, %v662
        %v664 = vpop.f32.mrb[0].mxu0
        %665 = vmatprep.mubr.bf16.mxu0 0
        %666 = vmatmul.mubr.bf16.gmra.mrb[0].mxu0 %v338
        %v667 = vpop.f32.mrb[0].mxu0
        %v668 = vadd.f32 0.0, %v667
        %v669 = vpop.f32.mrb[0].mxu0
        %v670 = vpop.f32.mrb[0].mxu0
        %v671 = vadd.f32 0.0, %v670
        %v672 = vpop.f32.mrb[0].mxu0
        %673 = vmatprep.mubr.bf16.mxu0 0
        %674 = vmatmul.mubr.bf16.gmra.mrb[0].mxu0 %v339
        %v675 = vpop.f32.mrb[0].mxu0
        %v676 = vadd.f32 0.0, %v675
        %v677 = vpop.f32.mrb[0].mxu0
        %v678 = vpop.f32.mrb[0].mxu0
        %v679 = vadd.f32 0.0, %v678
        %v680 = vpop.f32.mrb[0].mxu0
        %681 = vmatprep.mubr.bf16.mxu0 0
        %682 = vmatmul.mubr.bf16.gmra.mrb[0].mxu0 %v340
        %v683 = vpop.f32.mrb[0].mxu0
        %v684 = vadd.f32 0.0, %v683
        %v685 = vpop.f32.mrb[0].mxu0
        %v686 = vpop.f32.mrb[0].mxu0
        %v687 = vadd.f32 0.0, %v686
        %v688 = vpop.f32.mrb[0].mxu0
        %689 = vmatprep.mubr.bf16.mxu0 0
        %690 = vmatmul.mubr.bf16.gmra.mrb[0].mxu0 %v341
        %v691 = vpop.f32.mrb[0].mxu0
        %v692 = vadd.f32 0.0, %v691
        %v693 = vpop.f32.mrb[0].mxu0
        %v694 = vpop.f32.mrb[0].mxu0
        %v695 = vadd.f32 0.0, %v694
        %v696 = vpop.f32.mrb[0].mxu0
        %697 = vmatprep.mubr.bf16.mxu0 0
        %698 = vmatmul.mubr.bf16.gmra.mrb[0].mxu0 %v342
        %v699 = vpop.f32.mrb[0].mxu0
        %v700 = vadd.f32 0.0, %v699
        %v701 = vpop.f32.mrb[0].mxu0
        %v702 = vpop.f32.mrb[0].mxu0
        %v703 = vadd.f32 0.0, %v702
        %v704 = vpop.f32.mrb[0].mxu0
        %705 = vdwg.mxu0
        %v706 = vpack.c.bf16 %v647, %v644
        %v707 = vpack.c.bf16 %v655, %v652
        %v708 = vpack.c.bf16 %v663, %v660
        %v709 = vpack.c.bf16 %v671, %v668
        %v710 = vpack.c.bf16 %v679, %v676
        %v711 = vpack.c.bf16 %v687, %v684
        %v712 = vpack.c.bf16 %v695, %v692
        %v713 = vpack.c.bf16 %v703, %v700
        %v714 = vld [vmem:[#allocation7] sm:$0xf]
        %v715 = vld [vmem:[#allocation7 + $0x4] sm:$0xf]
        %v716 = vld [vmem:[#allocation7 + $0x8] sm:$0xf]
        %v717 = vld [vmem:[#allocation7 + $0xc] sm:$0xf]
        %v718 = vld [vmem:[#allocation7 + $0x10] sm:$0xf]
        %v719 = vld [vmem:[#allocation7 + $0x14] sm:$0xf]
        %v720 = vld [vmem:[#allocation7 + $0x18] sm:$0xf]
        %v721 = vld [vmem:[#allocation7 + $0x1c] sm:$0xf]
        %v722 = vld [vmem:[#allocation7 + $0x20] sm:$0xf]
        %v723 = vld [vmem:[#allocation7 + $0x24] sm:$0xf]
        %v724 = vld [vmem:[#allocation7 + $0x28] sm:$0xf]
        %v725 = vld [vmem:[#allocation7 + $0x2c] sm:$0xf]
        %v726 = vld [vmem:[#allocation7 + $0x30] sm:$0xf]
        %v727 = vld [vmem:[#allocation7 + $0x34] sm:$0xf]
        %v728 = vld [vmem:[#allocation7 + $0x38] sm:$0xf]
        %v729 = vld [vmem:[#allocation7 + $0x3c] sm:$0xf]
        %v730 = vld [vmem:[%s3] sm:$0x1]
        %v732 = vlaneseq
        %v733 = vshrl.u32 %v732, 7
        %v734 = vsub.s32 0, %v733
        %v735 = vrot.slane %v730, %v734
        %v753 = vunpack.c.l.b16 %v714
        %v754 = vunpack.c.l.b16 %v715
        %v755 = vunpack.c.l.b16 %v716
        %v756 = vunpack.c.l.b16 %v717
        %v757 = vunpack.c.l.b16 %v718
        %v758 = vunpack.c.l.b16 %v719
        %v759 = vunpack.c.l.b16 %v720
        %v760 = vunpack.c.l.b16 %v721
        %v761 = vunpack.c.l.b16 %v722
        %v762 = vunpack.c.l.b16 %v723
        %v763 = vunpack.c.l.b16 %v724
        %v764 = vunpack.c.l.b16 %v725
        %v765 = vunpack.c.l.b16 %v726
        %v766 = vunpack.c.l.b16 %v727
        %v767 = vunpack.c.l.b16 %v728
        %v768 = vunpack.c.l.b16 %v729
        %v769 = vpack.c.b16 %v754, %v753
        %v770 = vpack.c.b16 %v756, %v755
        %v771 = vpack.c.b16 %v758, %v757
        %v772 = vpack.c.b16 %v760, %v759
        %v773 = vpack.c.b16 %v762, %v761
        %v774 = vpack.c.b16 %v764, %v763
        %v775 = vpack.c.b16 %v766, %v765
        %v776 = vpack.c.b16 %v768, %v767
        %785 = vmatprep.subr.bf16.mxu0 0
        %786 = vmatpush1.bf16.msra.mxu0 %v769
        %787 = vmatprep.subr.bf16.mxu0 0
        %788 = vmatpush1.bf16.msra.mxu0 %v770
        %789 = vmatprep.subr.bf16.mxu0 0
        %790 = vmatpush1.bf16.msra.mxu0 %v771
        %791 = vmatprep.subr.bf16.mxu0 0
        %792 = vmatpush1.bf16.msra.mxu0 %v772
        %793 = vmatprep.subr.bf16.mxu0 0
        %794 = vmatpush1.bf16.msra.mxu0 %v773
        %795 = vmatprep.subr.bf16.mxu0 0
        %796 = vmatpush1.bf16.msra.mxu0 %v774
        %797 = vmatprep.subr.bf16.mxu0 0
        %798 = vmatpush1.bf16.msra.mxu0 %v775
        %799 = vmatprep.subr.bf16.mxu0 0
        %800 = vmatpush1.bf16.msra.mxu0 %v776
        %801 = vmatprep.subr.bf16.mxu0 0
        %802 = vmatpush1.bf16.msra.mxu0 0
        %803 = vmatprep.subr.bf16.mxu0 0
        %804 = vmatpush1.bf16.msra.mxu0 0
        %805 = vmatprep.subr.bf16.mxu0 0
        %806 = vmatpush1.bf16.msra.mxu0 0
        %807 = vmatprep.subr.bf16.mxu0 0
        %808 = vmatpush1.bf16.msra.mxu0 0
        %809 = vmatprep.subr.bf16.mxu0 0
        %810 = vmatpush1.bf16.msra.mxu0 0
        %811 = vmatprep.subr.bf16.mxu0 0
        %812 = vmatpush1.bf16.msra.mxu0 0
        %813 = vmatprep.subr.bf16.mxu0 0
        %814 = vmatpush1.bf16.msra.mxu0 0
        %815 = vmatprep.subr.bf16.mxu0 0
        %816 = vmatpush1.bf16.msra.mxu0 0
        %817 = vmatprep.mubr.bf16.mxu0 0
        %818 = vmatmul.mubr.bf16.gmra.mrb[0].mxu0 %v706
        %v819 = vpop.f32.mrb[0].mxu0
        %v820 = vadd.f32 %v735, %v819
        %v821 = vpop.f32.mrb[0].mxu0
        %v822 = vpop.f32.mrb[0].mxu0
        %v823 = vadd.f32 %v735, %v822
        %v824 = vpop.f32.mrb[0].mxu0
        %825 = vmatprep.mubr.bf16.mxu0 0
        %826 = vmatmul.mubr.bf16.gmra.mrb[0].mxu0 %v707
        %v827 = vpop.f32.mrb[0].mxu0
        %v828 = vadd.f32 %v735, %v827
        %v829 = vpop.f32.mrb[0].mxu0
        %v830 = vpop.f32.mrb[0].mxu0
        %v831 = vadd.f32 %v735, %v830
        %v832 = vpop.f32.mrb[0].mxu0
        %833 = vmatprep.mubr.bf16.mxu0 0
        %834 = vmatmul.mubr.bf16.gmra.mrb[0].mxu0 %v708
        %v835 = vpop.f32.mrb[0].mxu0
        %v836 = vadd.f32 %v735, %v835
        %v837 = vpop.f32.mrb[0].mxu0
        %v838 = vpop.f32.mrb[0].mxu0
        %v839 = vadd.f32 %v735, %v838
        %v840 = vpop.f32.mrb[0].mxu0
        %841 = vmatprep.mubr.bf16.mxu0 0
        %842 = vmatmul.mubr.bf16.gmra.mrb[0].mxu0 %v709
        %v843 = vpop.f32.mrb[0].mxu0
        %v844 = vadd.f32 %v735, %v843
        %v845 = vpop.f32.mrb[0].mxu0
        %v846 = vpop.f32.mrb[0].mxu0
        %v847 = vadd.f32 %v735, %v846
        %v848 = vpop.f32.mrb[0].mxu0
        %849 = vmatprep.mubr.bf16.mxu0 0
        %850 = vmatmul.mubr.bf16.gmra.mrb[0].mxu0 %v710
        %v851 = vpop.f32.mrb[0].mxu0
        %v852 = vadd.f32 %v735, %v851
        %v853 = vpop.f32.mrb[0].mxu0
        %v854 = vpop.f32.mrb[0].mxu0
        %v855 = vadd.f32 %v735, %v854
        %v856 = vpop.f32.mrb[0].mxu0
        %857 = vmatprep.mubr.bf16.mxu0 0
        %858 = vmatmul.mubr.bf16.gmra.mrb[0].mxu0 %v711
        %v859 = vpop.f32.mrb[0].mxu0
        %v860 = vadd.f32 %v735, %v859
        %v861 = vpop.f32.mrb[0].mxu0
        %v862 = vpop.f32.mrb[0].mxu0
        %v863 = vadd.f32 %v735, %v862
        %v864 = vpop.f32.mrb[0].mxu0
        %865 = vmatprep.mubr.bf16.mxu0 0
        %866 = vmatmul.mubr.bf16.gmra.mrb[0].mxu0 %v712
        %v867 = vpop.f32.mrb[0].mxu0
        %v868 = vadd.f32 %v735, %v867
        %v869 = vpop.f32.mrb[0].mxu0
        %v870 = vpop.f32.mrb[0].mxu0
        %v871 = vadd.f32 %v735, %v870
        %v872 = vpop.f32.mrb[0].mxu0
        %873 = vmatprep.mubr.bf16.mxu0 0
        %874 = vmatmul.mubr.bf16.gmra.mrb[0].mxu0 %v713
        %v875 = vpop.f32.mrb[0].mxu0
        %v876 = vadd.f32 %v735, %v875
        %v877 = vpop.f32.mrb[0].mxu0
        %v878 = vpop.f32.mrb[0].mxu0
        %v879 = vadd.f32 %v735, %v878
        %v880 = vpop.f32.mrb[0].mxu0
        %881 = vdwg.mxu0
        %882 = vst [vmem:[%s269] sm:$0xff] %v820
        %883 = vst [vmem:[%s269 + $0x8] sm:$0xff] %v823
        %884 = vst [vmem:[%s269 + $0x10] sm:$0xff] %v828
        %885 = vst [vmem:[%s269 + $0x18] sm:$0xff] %v831
        %886 = vst [vmem:[%s269 + $0x20] sm:$0xff] %v836
        %887 = vst [vmem:[%s269 + $0x28] sm:$0xff] %v839
        %888 = vst [vmem:[%s269 + $0x30] sm:$0xff] %v844
        %889 = vst [vmem:[%s269 + $0x38] sm:$0xff] %v847
        %890 = vst [vmem:[%s269 + $0x40] sm:$0xff] %v852
        %891 = vst [vmem:[%s269 + $0x48] sm:$0xff] %v855
        %892 = vst [vmem:[%s269 + $0x50] sm:$0xff] %v860
        %893 = vst [vmem:[%s269 + $0x58] sm:$0xff] %v863
        %894 = vst [vmem:[%s269 + $0x60] sm:$0xff] %v868
        %895 = vst [vmem:[%s269 + $0x68] sm:$0xff] %v871
        %896 = vst [vmem:[%s269 + $0x70] sm:$0xff] %v876
        %897 = vst [vmem:[%s269 + $0x78] sm:$0xff] %v879
        %s898 = sand.u32 %s126, 1
        %s899 = scalar_lea.sflag [#allocation4], %s898
        %s900 = sand.u32 %s126, 1
        %s901 = smul.addr %s900, 128
        %s902 = scalar_lea.vmem [#allocation8], %s901
        // Predicated region
        $region49: #{tpu_custom_call.1} parent=35 // pred_check
          %p903 = pneg %p136
        $region50: #{tpu_custom_call.1} parent=35 // pred_check_branch
          %905 = sbr.rel (%p903) target = $region52
        $region51: #{tpu_custom_call.1} parent=35 // pred_region
          %s907 = ssub.s32 2048, 2048
          %908 = vsyncadd %s899, %s907
          %s909 = smul.addr %s24, 16
          %s910 = smul.addr %s909, 128
          %s911 = scalar_lea.hbm %s4, %s910
          %s912 = sshll.u32 %s902, 4
          %s913 = int_to_ptr.vmem [resolvable:$true] %s912
          %918 = dma.vmem_to_hbm [thread:$0]  %s913, 2048, %s911, %s899, 128, 128, 8
        $region52: #{tpu_custom_call.1} parent=35 // pred_fallthru
          _
      $region36: #{tpu_custom_call.1} parent=5 // pred_fallthru
        _
      %p919 = scmp.le.s32.totalorder 2, %s19
      // Predicated region
      $region53: #{tpu_custom_call.1} parent=5 // pred_check
        %p920 = pneg %p919
      $region54: #{tpu_custom_call.1} parent=5 // pred_check_branch
        %922 = sbr.rel (%p920) target = $region56
      $region55: #{tpu_custom_call.1} parent=5 // pred_region
        %s923 = ssub.s32 %s19, 2
        // Predicated region
        $region57: #{tpu_custom_call.1} parent=55 // pred_check
          %p924 = pneg %p142
        $region58: #{tpu_custom_call.1} parent=55 // pred_check_branch
          %926 = sbr.rel (%p924) target = $region60
        $region59: #{tpu_custom_call.1} parent=55 // pred_region
          %s927 = sand.u32 %s127, 1
          %s928 = scalar_lea.sflag [#allocation4], %s927
          %s929 = sand.u32 %s127, 1
          %s930 = smul.addr %s929, 128
          %s931 = scalar_lea.vmem [#allocation8], %s930
          %932 = dma.done %s928, 2048
        $region60: #{tpu_custom_call.1} parent=55 // pred_fallthru
          _
      $region56: #{tpu_custom_call.1} parent=5 // pred_fallthru
        _
    $region6: #{tpu_custom_call.1} parent=1 // loop_footer
      %s23 = sadd.s32 1, %s19
    $region7: #{tpu_custom_call.1} parent=1 // loop_footer_branch
      %18 = sbr.rel target = $region3
    $region8: #{tpu_custom_call.1} parent=1 // loop_exit
      _
    %933 = vsyncpa [#allocation3], 1
    %s934 = scalar_lea.sflag [#allocation3], 1
    %935 = vsyncpa %s934, 1
    %936 = vsyncpa [#allocation6], 1
    %s937 = scalar_lea.sflag [#allocation6], 1
    %938 = vsyncpa %s937, 1
    %939 = vsyncpa [#allocation4], 1
    %s940 = scalar_lea.sflag [#allocation4], 1
    %941 = vsyncpa %s940, 1

</llo_original>
